<compile_context>
chip_gen: v6e
topology: v6e:2x2x1
jax: 0.10.0
libtpu: 0.0.40
codegen_flags: <defaults>
</compile_context>

<pallas_src>
import functools

import jax
import jax.numpy as jnp
from jax import lax
from jax.experimental import pallas as pl
from jax.experimental.pallas import tpu as pltpu

BN_EPS = 1e-5


# ---------------------------------------------------------------------------
# Kernel A: channel pool (gridded reduction) + dilated conv + 1x1 conv +
#           BatchNorm(1) + sigmoid  ->  attention map `scale` of shape (N, H*W)
# ---------------------------------------------------------------------------
def _scale_kernel(x_ref, mask_ref, w1_ref, p_ref, o_ref, max_ref, sum_ref,
                  *, C, H, W, K, pad, dil):
    hw = H * W
    cb = pl.program_id(0)

    xblk = x_ref[...]                          # (N, BC, HW) f32, lane-dense
    blk_max = jnp.max(xblk, axis=1)            # (N, HW)
    blk_sum = jnp.sum(xblk, axis=1)            # (N, HW)

    @pl.when(cb == 0)
    def _init():
        max_ref[...] = jnp.full_like(max_ref, -jnp.inf)
        sum_ref[...] = jnp.zeros_like(sum_ref)

    max_ref[...] = jnp.maximum(max_ref[...], blk_max)
    sum_ref[...] = sum_ref[...] + blk_sum

    @pl.when(cb == pl.num_programs(0) - 1)
    def _finalize():
        cmax = max_ref[...]                       # torch.max(x, 1).values
        cmean = sum_ref[...] * (1.0 / float(C))   # torch.mean(x, 1)

        # Dilated KxK conv (2 in ch -> 1 out ch, stride 1, zero padding `pad`)
        # on the pooled maps, done as statically-unrolled tap shifts on the
        # flat (lane-dense) spatial axis + host-precomputed validity masks.
        acc = jnp.zeros(cmax.shape, jnp.float32)
        for cin, src in enumerate((cmax, cmean)):            # cat order: max, mean
            for ky in range(K):
                off_y = dil * ky - pad
                for kx in range(K):
                    off_x = dil * kx - pad
                    off = off_y * W + off_x                   # flat source offset
                    shift = (-off) % hw
                    shifted = src if shift == 0 else pltpu.roll(src, shift, axis=1)
                    t = ky * K + kx
                    m = mask_ref[t:t + 1, :]                  # (1, HW) border mask
                    w = w1_ref[cin * K * K + t]               # SMEM scalar weight
                    acc = acc + w * (shifted * m)

        # 1x1 conv (single scalar weight) + BatchNorm2d(1) with training-mode
        # batch statistics (biased variance, eps=1e-5) + sigmoid.
        # TODO(synk): BatchNorm running_mean/running_var buffer updates are a
        # training-time side effect and are not modeled here.
        s = acc * p_ref[0]
        mean = jnp.mean(s, axis=(0, 1), keepdims=True)                 # (1, 1)
        var = jnp.mean((s - mean) ** 2, axis=(0, 1), keepdims=True)    # biased
        bn = (s - mean) * lax.rsqrt(var + BN_EPS) * p_ref[1] + p_ref[2]
        o_ref[...] = 1.0 / (1.0 + jnp.exp(-bn))                        # sigmoid


# ---------------------------------------------------------------------------
# Kernel B: out = x * scale   (lane-dense streaming multiply, fully parallel)
# ---------------------------------------------------------------------------
def _modulate_kernel(x_ref, s_ref, o_ref):
    # x_ref: (1, BC, HW); s_ref: (1, 1, HW) broadcast over the channel block.
    o_ref[...] = x_ref[...] * s_ref[...]


def _channel_block(C, preferred=64):
    return preferred if C % preferred == 0 else C


def _tap_masks(H, W, K, pad, dil):
    """mask[t, y*W + x] = 1 iff tap t=(ky,kx) reads inside the (zero-padded) image."""
    ys = jnp.arange(H)
    xs = jnp.arange(W)
    rows = []
    for ky in range(K):
        off_y = dil * ky - pad
        my = ((ys + off_y >= 0) & (ys + off_y < H)).astype(jnp.float32)      # (H,)
        for kx in range(K):
            off_x = dil * kx - pad
            mx = ((xs + off_x >= 0) & (xs + off_x < W)).astype(jnp.float32)  # (W,)
            rows.append((my[:, None] * mx[None, :]).reshape(H * W))
    return jnp.stack(rows)                                                   # (K*K, H*W)


def dilconv_attention_forward(x, w1, w2, gamma, beta, *,
                              stride=1, padding=2, dilation=2):
    """x: (N,C,H,W) f32.  w1: (1,2,K,K) dilated-conv weight.  w2: () 1x1-conv weight.
    gamma/beta: () BatchNorm2d(1, affine=True) parameters."""
    N, C, H, W = x.shape
    _, two, K, K2 = w1.shape
    assert two == 2 and K == K2
    assert stride == 1, "x * scale requires a spatial-size-preserving conv"
    assert 2 * padding == dilation * (K - 1), "conv must preserve H, W"

    HW = H * W
    x3 = x.reshape(N, C, HW)                          # free, lane-dense view
    masks = _tap_masks(H, W, K, padding, dilation)    # (K*K, HW)
    w1_flat = w1.reshape(-1).astype(jnp.float32)      # idx = cin*K*K + ky*K + kx
    params = jnp.stack([jnp.asarray(w2, jnp.float32).reshape(()),
                        jnp.asarray(gamma, jnp.float32).reshape(()),
                        jnp.asarray(beta, jnp.float32).reshape(())])

    # ---- Kernel A: attention map -------------------------------------------
    BCA = _channel_block(C)
    kernel_a = functools.partial(_scale_kernel, C=C, H=H, W=W, K=K,
                                 pad=padding, dil=dilation)
    scale = pl.pallas_call(
        kernel_a,
        out_shape=jax.ShapeDtypeStruct((N, HW), jnp.float32),
        grid=(C // BCA,),
        in_specs=[
            pl.BlockSpec((N, BCA, HW), lambda cb: (0, cb, 0)),
            pl.BlockSpec((K * K, HW), lambda cb: (0, 0)),
            pl.BlockSpec(memory_space=pltpu.MemorySpace.SMEM),
            pl.BlockSpec(memory_space=pltpu.MemorySpace.SMEM),
        ],
        out_specs=pl.BlockSpec((N, HW), lambda cb: (0, 0)),
        scratch_shapes=[pltpu.VMEM((N, HW), jnp.float32),   # running channel max
                        pltpu.VMEM((N, HW), jnp.float32)],  # running channel sum
        compiler_params=pltpu.CompilerParams(
            dimension_semantics=("arbitrary",)),
    )(x3, masks, w1_flat, params)

    # ---- Kernel B: out = x * scale ------------------------------------------
    BC = _channel_block(C)
    scale3 = scale.reshape(N, 1, HW)
    out = pl.pallas_call(
        _modulate_kernel,
        out_shape=jax.ShapeDtypeStruct((N, C, HW), jnp.float32),
        grid=(N, C // BC),
        in_specs=[
            pl.BlockSpec((1, BC, HW), lambda n, cb: (n, cb, 0)),
            pl.BlockSpec((1, 1, HW), lambda n, cb: (n, 0, 0)),
        ],
        out_specs=pl.BlockSpec((1, BC, HW), lambda n, cb: (n, cb, 0)),
        compiler_params=pltpu.CompilerParams(
            dimension_semantics=("parallel", "parallel")),
    )(x3, scale3)
    return out.reshape(N, C, H, W)


def dilconv_attention_reference(x, w1, w2, gamma, beta, *, padding=2, dilation=2):
    """Pure-JAX mirror of the PyTorch module (training-mode BatchNorm)."""
    cmax = jnp.max(x, axis=1, keepdims=True)
    cmean = jnp.mean(x, axis=1, keepdims=True)
    comp = jnp.concatenate([cmax, cmean], axis=1)                # ChannelPool
    a = lax.conv_general_dilated(
        comp, w1, window_strides=(1, 1),
        padding=((padding, padding), (padding, padding)),
        rhs_dilation=(dilation, dilation),
        dimension_numbers=("NCHW", "OIHW", "NCHW"))
    a = a * w2                                                   # Conv2d(1,1,1), no bias
    mean = jnp.mean(a)
    var = jnp.mean((a - mean) ** 2)                              # biased batch variance
    a = gamma * (a - mean) / jnp.sqrt(var + BN_EPS) + beta       # BatchNorm2d(1)
    return x * jax.nn.sigmoid(a)


if __name__ == "__main__":
    N, C, H, W = 2, 4, 16, 16        # H*W = 256 -> lane-dense last dim
    K, PAD, DIL = 3, 2, 2            # DilConvAttention(..., kernel_size=3, stride=1,
                                     #                   padding=2, dilation=2)
    key = jax.random.PRNGKey(0)
    kx_, kw1, kw2 = jax.random.split(key, 3)
    x = jax.random.normal(kx_, (N, C, H, W), dtype=jnp.float32)
    w1 = 0.3 * jax.random.normal(kw1, (1, 2, K, K), dtype=jnp.float32)  # Conv2d(2,1,3,dil=2)
    w2 = 0.7 * jax.random.normal(kw2, (), dtype=jnp.float32)            # Conv2d(1,1,1)
    gamma = jnp.float32(1.1)         # BatchNorm2d(1, affine=True) weight (init 1.0)
    beta = jnp.float32(-0.05)        # BatchNorm2d(1, affine=True) bias   (init 0.0)

    out = dilconv_attention_forward(x, w1, w2, gamma, beta,
                                    stride=1, padding=PAD, dilation=DIL)
    out = jax.block_until_ready(out)

    ref = dilconv_attention_reference(x, w1, w2, gamma, beta,
                                      padding=PAD, dilation=DIL)
    assert out.shape == x.shape
    err = float(jnp.max(jnp.abs(out - ref)))
    assert jnp.allclose(out, ref, atol=1e-4, rtol=1e-4), f"max abs err {err}"
    print("KERNEL_OK")
</pallas_src>

<mosaic_0001>
module attributes {stable_mosaic.version = 11 : i64} {
  func.func @_scale_kernel(%arg0: i32, %arg1: memref<2x4x256xf32, #tpu.memory_space<vmem>>, %arg2: memref<9x256xf32, #tpu.memory_space<vmem>>, %arg3: memref<18xf32, #tpu.memory_space<smem>>, %arg4: memref<3xf32, #tpu.memory_space<smem>>, %arg5: memref<2x256xf32, #tpu.memory_space<vmem>>, %arg6: memref<2x256xf32, #tpu.memory_space<vmem>>, %arg7: memref<2x256xf32, #tpu.memory_space<vmem>>) attributes {dimension_semantics = [#tpu.dimension_semantics<arbitrary>], iteration_bounds = array<i64: 1>, scalar_prefetch = 0 : i64, scratch_operands = 2 : i64, tpu.core_type = #tpu.core_type<tc>, window_params = [{transform_indices = @transform_0, window_bounds = array<i64: 2, 4, 256>}, {pipeline_mode = #tpu.pipeline_mode<synchronous>, transform_indices = @transform_1, window_bounds = array<i64: 9, 256>}, {transform_indices = @transform_2, window_bounds = array<i64: 18>}, {transform_indices = @transform_3, window_bounds = array<i64: 3>}, {pipeline_mode = #tpu.pipeline_mode<synchronous>, transform_indices = @transform_4, window_bounds = array<i64: 2, 256>}]} {
    %c0 = arith.constant 0 : index
    %c0_0 = arith.constant 0 : index
    %c0_1 = arith.constant 0 : index
    %0 = vector.load %arg1[%c0, %c0_0, %c0_1] : memref<2x4x256xf32, #tpu.memory_space<vmem>>, vector<2x4x256xf32>
    %cst = arith.constant dense<0xFF800000> : vector<2x256xf32>
    %1 = vector.multi_reduction <maximumf>, %0, %cst [1] : vector<2x4x256xf32> to vector<2x256xf32>
    %cst_2 = arith.constant dense<0.000000e+00> : vector<2x256xf32>
    %2 = vector.multi_reduction <add>, %0, %cst_2 [1] : vector<2x4x256xf32> to vector<2x256xf32>
    %c0_i32 = arith.constant 0 : i32
    %3 = arith.cmpi eq, %arg0, %c0_i32 : i32
    %4 = arith.extui %3 : i1 to i32
    %c0_i32_3 = arith.constant 0 : i32
    %5 = arith.cmpi ne, %4, %c0_i32_3 : i32
    scf.if %5 {
      %cst_14 = arith.constant 0xFF800000 : f32
      %15 = vector.broadcast %cst_14 : f32 to vector<2x256xf32>
      %c0_15 = arith.constant 0 : index
      %c0_16 = arith.constant 0 : index
      %16 = vector.load %arg6[%c0_15, %c0_16] : memref<2x256xf32, #tpu.memory_space<vmem>>, vector<2x256xf32>
      tpu.vector_store %arg6[%c0_15, %c0_16], %15 {strides = array<i32>} : memref<2x256xf32, #tpu.memory_space<vmem>>, vector<2x256xf32>,
      %cst_17 = arith.constant 0.000000e+00 : f32
      %17 = vector.broadcast %cst_17 : f32 to vector<2x256xf32>
      %c0_18 = arith.constant 0 : index
      %c0_19 = arith.constant 0 : index
      %18 = vector.load %arg7[%c0_18, %c0_19] : memref<2x256xf32, #tpu.memory_space<vmem>>, vector<2x256xf32>
      tpu.vector_store %arg7[%c0_18, %c0_19], %17 {strides = array<i32>} : memref<2x256xf32, #tpu.memory_space<vmem>>, vector<2x256xf32>,
    } else {
    }
    %c0_4 = arith.constant 0 : index
    %c0_5 = arith.constant 0 : index
    %6 = vector.load %arg6[%c0_4, %c0_5] : memref<2x256xf32, #tpu.memory_space<vmem>>, vector<2x256xf32>
    %7 = arith.maximumf %6, %1 : vector<2x256xf32>
    %c0_6 = arith.constant 0 : index
    %c0_7 = arith.constant 0 : index
    %8 = vector.load %arg6[%c0_6, %c0_7] : memref<2x256xf32, #tpu.memory_space<vmem>>, vector<2x256xf32>
    tpu.vector_store %arg6[%c0_6, %c0_7], %7 {strides = array<i32>} : memref<2x256xf32, #tpu.memory_space<vmem>>, vector<2x256xf32>,
    %c0_8 = arith.constant 0 : index
    %c0_9 = arith.constant 0 : index
    %9 = vector.load %arg7[%c0_8, %c0_9] : memref<2x256xf32, #tpu.memory_space<vmem>>, vector<2x256xf32>
    %10 = arith.addf %9, %2 : vector<2x256xf32>
    %c0_10 = arith.constant 0 : index
    %c0_11 = arith.constant 0 : index
    %11 = vector.load %arg7[%c0_10, %c0_11] : memref<2x256xf32, #tpu.memory_space<vmem>>, vector<2x256xf32>
    tpu.vector_store %arg7[%c0_10, %c0_11], %10 {strides = array<i32>} : memref<2x256xf32, #tpu.memory_space<vmem>>, vector<2x256xf32>,
    %c0_i32_12 = arith.constant 0 : i32
    %12 = arith.cmpi eq, %arg0, %c0_i32_12 : i32
    %13 = arith.extui %12 : i1 to i32
    %c0_i32_13 = arith.constant 0 : i32
    %14 = arith.cmpi ne, %13, %c0_i32_13 : i32
    scf.if %14 {
      %c0_14 = arith.constant 0 : index
      %c0_15 = arith.constant 0 : index
      %15 = vector.load %arg6[%c0_14, %c0_15] : memref<2x256xf32, #tpu.memory_space<vmem>>, vector<2x256xf32>
      %c0_16 = arith.constant 0 : index
      %c0_17 = arith.constant 0 : index
      %16 = vector.load %arg7[%c0_16, %c0_17] : memref<2x256xf32, #tpu.memory_space<vmem>>, vector<2x256xf32>
      %cst_18 = arith.constant 2.500000e-01 : f32
      %17 = vector.broadcast %cst_18 : f32 to vector<2x256xf32>
      %18 = arith.mulf %16, %17 : vector<2x256xf32>
      %cst_19 = arith.constant 0.000000e+00 : f32
      %19 = vector.broadcast %cst_19 : f32 to vector<2x256xf32>
      %c34_i32 = arith.constant 34 : i32
      %20 = tpu.dynamic_rotate %15 by %c34_i32 dim 1 : vector<2x256xf32>, i32 -> vector<2x256xf32>
      %c0_20 = arith.constant 0 : index
      %c0_21 = arith.constant 0 : index
      %21 = vector.load %arg2[%c0_20, %c0_21] : memref<9x256xf32, #tpu.memory_space<vmem>>, vector<1x256xf32>
      %c0_22 = arith.constant 0 : index
      %22 = memref.load %arg3[%c0_22] : memref<18xf32, #tpu.memory_space<smem>>
      %23 = vector.broadcast %21 : vector<1x256xf32> to vector<2x256xf32>
      %24 = arith.mulf %20, %23 : vector<2x256xf32>
      %25 = vector.broadcast %22 : f32 to vector<2x256xf32>
      %26 = arith.mulf %25, %24 : vector<2x256xf32>
      %27 = arith.addf %19, %26 : vector<2x256xf32>
      %c32_i32 = arith.constant 32 : i32
      %28 = tpu.dynamic_rotate %15 by %c32_i32 dim 1 : vector<2x256xf32>, i32 -> vector<2x256xf32>
      %c1 = arith.constant 1 : index
      %c0_23 = arith.constant 0 : index
      %29 = vector.load %arg2[%c1, %c0_23] : memref<9x256xf32, #tpu.memory_space<vmem>>, vector<1x256xf32>
      %c1_24 = arith.constant 1 : index
      %30 = memref.load %arg3[%c1_24] : memref<18xf32, #tpu.memory_space<smem>>
      %31 = vector.broadcast %29 : vector<1x256xf32> to vector<2x256xf32>
      %32 = arith.mulf %28, %31 : vector<2x256xf32>
      %33 = vector.broadcast %30 : f32 to vector<2x256xf32>
      %34 = arith.mulf %33, %32 : vector<2x256xf32>
      %35 = arith.addf %27, %34 : vector<2x256xf32>
      %c30_i32 = arith.constant 30 : i32
      %36 = tpu.dynamic_rotate %15 by %c30_i32 dim 1 : vector<2x256xf32>, i32 -> vector<2x256xf32>
      %c2 = arith.constant 2 : index
      %c0_25 = arith.constant 0 : index
      %37 = vector.load %arg2[%c2, %c0_25] : memref<9x256xf32, #tpu.memory_space<vmem>>, vector<1x256xf32>
      %c2_26 = arith.constant 2 : index
      %38 = memref.load %arg3[%c2_26] : memref<18xf32, #tpu.memory_space<smem>>
      %39 = vector.broadcast %37 : vector<1x256xf32> to vector<2x256xf32>
      %40 = arith.mulf %36, %39 : vector<2x256xf32>
      %41 = vector.broadcast %38 : f32 to vector<2x256xf32>
      %42 = arith.mulf %41, %40 : vector<2x256xf32>
      %43 = arith.addf %35, %42 : vector<2x256xf32>
      %c2_i32 = arith.constant 2 : i32
      %44 = tpu.dynamic_rotate %15 by %c2_i32 dim 1 : vector<2x256xf32>, i32 -> vector<2x256xf32>
      %c3 = arith.constant 3 : index
      %c0_27 = arith.constant 0 : index
      %45 = vector.load %arg2[%c3, %c0_27] : memref<9x256xf32, #tpu.memory_space<vmem>>, vector<1x256xf32>
      %c3_28 = arith.constant 3 : index
      %46 = memref.load %arg3[%c3_28] : memref<18xf32, #tpu.memory_space<smem>>
      %47 = vector.broadcast %45 : vector<1x256xf32> to vector<2x256xf32>
      %48 = arith.mulf %44, %47 : vector<2x256xf32>
      %49 = vector.broadcast %46 : f32 to vector<2x256xf32>
      %50 = arith.mulf %49, %48 : vector<2x256xf32>
      %51 = arith.addf %43, %50 : vector<2x256xf32>
      %c4 = arith.constant 4 : index
      %c0_29 = arith.constant 0 : index
      %52 = vector.load %arg2[%c4, %c0_29] : memref<9x256xf32, #tpu.memory_space<vmem>>, vector<1x256xf32>
      %c4_30 = arith.constant 4 : index
      %53 = memref.load %arg3[%c4_30] : memref<18xf32, #tpu.memory_space<smem>>
      %54 = vector.broadcast %52 : vector<1x256xf32> to vector<2x256xf32>
      %55 = arith.mulf %15, %54 : vector<2x256xf32>
      %56 = vector.broadcast %53 : f32 to vector<2x256xf32>
      %57 = arith.mulf %56, %55 : vector<2x256xf32>
      %58 = arith.addf %51, %57 : vector<2x256xf32>
      %c254_i32 = arith.constant 254 : i32
      %59 = tpu.dynamic_rotate %15 by %c254_i32 dim 1 : vector<2x256xf32>, i32 -> vector<2x256xf32>
      %c5 = arith.constant 5 : index
      %c0_31 = arith.constant 0 : index
      %60 = vector.load %arg2[%c5, %c0_31] : memref<9x256xf32, #tpu.memory_space<vmem>>, vector<1x256xf32>
      %c5_32 = arith.constant 5 : index
      %61 = memref.load %arg3[%c5_32] : memref<18xf32, #tpu.memory_space<smem>>
      %62 = vector.broadcast %60 : vector<1x256xf32> to vector<2x256xf32>
      %63 = arith.mulf %59, %62 : vector<2x256xf32>
      %64 = vector.broadcast %61 : f32 to vector<2x256xf32>
      %65 = arith.mulf %64, %63 : vector<2x256xf32>
      %66 = arith.addf %58, %65 : vector<2x256xf32>
      %c226_i32 = arith.constant 226 : i32
      %67 = tpu.dynamic_rotate %15 by %c226_i32 dim 1 : vector<2x256xf32>, i32 -> vector<2x256xf32>
      %c6 = arith.constant 6 : index
      %c0_33 = arith.constant 0 : index
      %68 = vector.load %arg2[%c6, %c0_33] : memref<9x256xf32, #tpu.memory_space<vmem>>, vector<1x256xf32>
      %c6_34 = arith.constant 6 : index
      %69 = memref.load %arg3[%c6_34] : memref<18xf32, #tpu.memory_space<smem>>
      %70 = vector.broadcast %68 : vector<1x256xf32> to vector<2x256xf32>
      %71 = arith.mulf %67, %70 : vector<2x256xf32>
      %72 = vector.broadcast %69 : f32 to vector<2x256xf32>
      %73 = arith.mulf %72, %71 : vector<2x256xf32>
      %74 = arith.addf %66, %73 : vector<2x256xf32>
      %c224_i32 = arith.constant 224 : i32
      %75 = tpu.dynamic_rotate %15 by %c224_i32 dim 1 : vector<2x256xf32>, i32 -> vector<2x256xf32>
      %c7 = arith.constant 7 : index
      %c0_35 = arith.constant 0 : index
      %76 = vector.load %arg2[%c7, %c0_35] : memref<9x256xf32, #tpu.memory_space<vmem>>, vector<1x256xf32>
      %c7_36 = arith.constant 7 : index
      %77 = memref.load %arg3[%c7_36] : memref<18xf32, #tpu.memory_space<smem>>
      %78 = vector.broadcast %76 : vector<1x256xf32> to vector<2x256xf32>
      %79 = arith.mulf %75, %78 : vector<2x256xf32>
      %80 = vector.broadcast %77 : f32 to vector<2x256xf32>
      %81 = arith.mulf %80, %79 : vector<2x256xf32>
      %82 = arith.addf %74, %81 : vector<2x256xf32>
      %c222_i32 = arith.constant 222 : i32
      %83 = tpu.dynamic_rotate %15 by %c222_i32 dim 1 : vector<2x256xf32>, i32 -> vector<2x256xf32>
      %c8 = arith.constant 8 : index
      %c0_37 = arith.constant 0 : index
      %84 = vector.load %arg2[%c8, %c0_37] : memref<9x256xf32, #tpu.memory_space<vmem>>, vector<1x256xf32>
      %c8_38 = arith.constant 8 : index
      %85 = memref.load %arg3[%c8_38] : memref<18xf32, #tpu.memory_space<smem>>
      %86 = vector.broadcast %84 : vector<1x256xf32> to vector<2x256xf32>
      %87 = arith.mulf %83, %86 : vector<2x256xf32>
      %88 = vector.broadcast %85 : f32 to vector<2x256xf32>
      %89 = arith.mulf %88, %87 : vector<2x256xf32>
      %90 = arith.addf %82, %89 : vector<2x256xf32>
      %c34_i32_39 = arith.constant 34 : i32
      %91 = tpu.dynamic_rotate %18 by %c34_i32_39 dim 1 : vector<2x256xf32>, i32 -> vector<2x256xf32>
      %c0_40 = arith.constant 0 : index
      %c0_41 = arith.constant 0 : index
      %92 = vector.load %arg2[%c0_40, %c0_41] : memref<9x256xf32, #tpu.memory_space<vmem>>, vector<1x256xf32>
      %c9 = arith.constant 9 : index
      %93 = memref.load %arg3[%c9] : memref<18xf32, #tpu.memory_space<smem>>
      %94 = vector.broadcast %92 : vector<1x256xf32> to vector<2x256xf32>
      %95 = arith.mulf %91, %94 : vector<2x256xf32>
      %96 = vector.broadcast %93 : f32 to vector<2x256xf32>
      %97 = arith.mulf %96, %95 : vector<2x256xf32>
      %98 = arith.addf %90, %97 : vector<2x256xf32>
      %c32_i32_42 = arith.constant 32 : i32
      %99 = tpu.dynamic_rotate %18 by %c32_i32_42 dim 1 : vector<2x256xf32>, i32 -> vector<2x256xf32>
      %c1_43 = arith.constant 1 : index
      %c0_44 = arith.constant 0 : index
      %100 = vector.load %arg2[%c1_43, %c0_44] : memref<9x256xf32, #tpu.memory_space<vmem>>, vector<1x256xf32>
      %c10 = arith.constant 10 : index
      %101 = memref.load %arg3[%c10] : memref<18xf32, #tpu.memory_space<smem>>
      %102 = vector.broadcast %100 : vector<1x256xf32> to vector<2x256xf32>
      %103 = arith.mulf %99, %102 : vector<2x256xf32>
      %104 = vector.broadcast %101 : f32 to vector<2x256xf32>
      %105 = arith.mulf %104, %103 : vector<2x256xf32>
      %106 = arith.addf %98, %105 : vector<2x256xf32>
      %c30_i32_45 = arith.constant 30 : i32
      %107 = tpu.dynamic_rotate %18 by %c30_i32_45 dim 1 : vector<2x256xf32>, i32 -> vector<2x256xf32>
      %c2_46 = arith.constant 2 : index
      %c0_47 = arith.constant 0 : index
      %108 = vector.load %arg2[%c2_46, %c0_47] : memref<9x256xf32, #tpu.memory_space<vmem>>, vector<1x256xf32>
      %c11 = arith.constant 11 : index
      %109 = memref.load %arg3[%c11] : memref<18xf32, #tpu.memory_space<smem>>
      %110 = vector.broadcast %108 : vector<1x256xf32> to vector<2x256xf32>
      %111 = arith.mulf %107, %110 : vector<2x256xf32>
      %112 = vector.broadcast %109 : f32 to vector<2x256xf32>
      %113 = arith.mulf %112, %111 : vector<2x256xf32>
      %114 = arith.addf %106, %113 : vector<2x256xf32>
      %c2_i32_48 = arith.constant 2 : i32
      %115 = tpu.dynamic_rotate %18 by %c2_i32_48 dim 1 : vector<2x256xf32>, i32 -> vector<2x256xf32>
      %c3_49 = arith.constant 3 : index
      %c0_50 = arith.constant 0 : index
      %116 = vector.load %arg2[%c3_49, %c0_50] : memref<9x256xf32, #tpu.memory_space<vmem>>, vector<1x256xf32>
      %c12 = arith.constant 12 : index
      %117 = memref.load %arg3[%c12] : memref<18xf32, #tpu.memory_space<smem>>
      %118 = vector.broadcast %116 : vector<1x256xf32> to vector<2x256xf32>
      %119 = arith.mulf %115, %118 : vector<2x256xf32>
      %120 = vector.broadcast %117 : f32 to vector<2x256xf32>
      %121 = arith.mulf %120, %119 : vector<2x256xf32>
      %122 = arith.addf %114, %121 : vector<2x256xf32>
      %c4_51 = arith.constant 4 : index
      %c0_52 = arith.constant 0 : index
      %123 = vector.load %arg2[%c4_51, %c0_52] : memref<9x256xf32, #tpu.memory_space<vmem>>, vector<1x256xf32>
      %c13 = arith.constant 13 : index
      %124 = memref.load %arg3[%c13] : memref<18xf32, #tpu.memory_space<smem>>
      %125 = vector.broadcast %123 : vector<1x256xf32> to vector<2x256xf32>
      %126 = arith.mulf %18, %125 : vector<2x256xf32>
      %127 = vector.broadcast %124 : f32 to vector<2x256xf32>
      %128 = arith.mulf %127, %126 : vector<2x256xf32>
      %129 = arith.addf %122, %128 : vector<2x256xf32>
      %c254_i32_53 = arith.constant 254 : i32
      %130 = tpu.dynamic_rotate %18 by %c254_i32_53 dim 1 : vector<2x256xf32>, i32 -> vector<2x256xf32>
      %c5_54 = arith.constant 5 : index
      %c0_55 = arith.constant 0 : index
      %131 = vector.load %arg2[%c5_54, %c0_55] : memref<9x256xf32, #tpu.memory_space<vmem>>, vector<1x256xf32>
      %c14 = arith.constant 14 : index
      %132 = memref.load %arg3[%c14] : memref<18xf32, #tpu.memory_space<smem>>
      %133 = vector.broadcast %131 : vector<1x256xf32> to vector<2x256xf32>
      %134 = arith.mulf %130, %133 : vector<2x256xf32>
      %135 = vector.broadcast %132 : f32 to vector<2x256xf32>
      %136 = arith.mulf %135, %134 : vector<2x256xf32>
      %137 = arith.addf %129, %136 : vector<2x256xf32>
      %c226_i32_56 = arith.constant 226 : i32
      %138 = tpu.dynamic_rotate %18 by %c226_i32_56 dim 1 : vector<2x256xf32>, i32 -> vector<2x256xf32>
      %c6_57 = arith.constant 6 : index
      %c0_58 = arith.constant 0 : index
      %139 = vector.load %arg2[%c6_57, %c0_58] : memref<9x256xf32, #tpu.memory_space<vmem>>, vector<1x256xf32>
      %c15 = arith.constant 15 : index
      %140 = memref.load %arg3[%c15] : memref<18xf32, #tpu.memory_space<smem>>
      %141 = vector.broadcast %139 : vector<1x256xf32> to vector<2x256xf32>
      %142 = arith.mulf %138, %141 : vector<2x256xf32>
      %143 = vector.broadcast %140 : f32 to vector<2x256xf32>
      %144 = arith.mulf %143, %142 : vector<2x256xf32>
      %145 = arith.addf %137, %144 : vector<2x256xf32>
      %c224_i32_59 = arith.constant 224 : i32
      %146 = tpu.dynamic_rotate %18 by %c224_i32_59 dim 1 : vector<2x256xf32>, i32 -> vector<2x256xf32>
      %c7_60 = arith.constant 7 : index
      %c0_61 = arith.constant 0 : index
      %147 = vector.load %arg2[%c7_60, %c0_61] : memref<9x256xf32, #tpu.memory_space<vmem>>, vector<1x256xf32>
      %c16 = arith.constant 16 : index
      %148 = memref.load %arg3[%c16] : memref<18xf32, #tpu.memory_space<smem>>
      %149 = vector.broadcast %147 : vector<1x256xf32> to vector<2x256xf32>
      %150 = arith.mulf %146, %149 : vector<2x256xf32>
      %151 = vector.broadcast %148 : f32 to vector<2x256xf32>
      %152 = arith.mulf %151, %150 : vector<2x256xf32>
      %153 = arith.addf %145, %152 : vector<2x256xf32>
      %c222_i32_62 = arith.constant 222 : i32
      %154 = tpu.dynamic_rotate %18 by %c222_i32_62 dim 1 : vector<2x256xf32>, i32 -> vector<2x256xf32>
      %c8_63 = arith.constant 8 : index
      %c0_64 = arith.constant 0 : index
      %155 = vector.load %arg2[%c8_63, %c0_64] : memref<9x256xf32, #tpu.memory_space<vmem>>, vector<1x256xf32>
      %c17 = arith.constant 17 : index
      %156 = memref.load %arg3[%c17] : memref<18xf32, #tpu.memory_space<smem>>
      %157 = vector.broadcast %155 : vector<1x256xf32> to vector<2x256xf32>
      %158 = arith.mulf %154, %157 : vector<2x256xf32>
      %159 = vector.broadcast %156 : f32 to vector<2x256xf32>
      %160 = arith.mulf %159, %158 : vector<2x256xf32>
      %161 = arith.addf %153, %160 : vector<2x256xf32>
      %c0_65 = arith.constant 0 : index
      %162 = memref.load %arg4[%c0_65] : memref<3xf32, #tpu.memory_space<smem>>
      %163 = vector.broadcast %162 : f32 to vector<2x256xf32>
      %164 = arith.mulf %161, %163 : vector<2x256xf32>
      %165 = vector.shape_cast %164 : vector<2x256xf32> to vector<1x2x256xf32>
      %cst_66 = arith.constant dense<0.000000e+00> : vector<1xf32>
      %166 = vector.multi_reduction <add>, %165, %cst_66 [1, 2] : vector<1x2x256xf32> to vector<1xf32>
      %167 = vector.shape_cast %166 : vector<1xf32> to vector<1x1x1xf32>
      %168 = vector.extract %167[0, 0, 0] : f32 from vector<1x1x1xf32>
      %169 = vector.broadcast %168 : f32 to vector<1x1xf32>
      %cst_67 = arith.constant 5.120000e+02 : f32
      %170 = vector.broadcast %cst_67 : f32 to vector<1x1xf32>
      %171 = arith.divf %169, %170 : vector<1x1xf32>
      %172 = vector.broadcast %171 : vector<1x1xf32> to vector<2x256xf32>
      %173 = arith.subf %164, %172 : vector<2x256xf32>
      %174 = arith.mulf %173, %173 : vector<2x256xf32>
      %175 = vector.shape_cast %174 : vector<2x256xf32> to vector<1x2x256xf32>
      %cst_68 = arith.constant dense<0.000000e+00> : vector<1xf32>
      %176 = vector.multi_reduction <add>, %175, %cst_68 [1, 2] : vector<1x2x256xf32> to vector<1xf32>
      %177 = vector.shape_cast %176 : vector<1xf32> to vector<1x1x1xf32>
      %178 = vector.extract %177[0, 0, 0] : f32 from vector<1x1x1xf32>
      %179 = vector.broadcast %178 : f32 to vector<1x1xf32>
      %cst_69 = arith.constant 5.120000e+02 : f32
      %180 = vector.broadcast %cst_69 : f32 to vector<1x1xf32>
      %181 = arith.divf %179, %180 : vector<1x1xf32>
      %182 = vector.broadcast %171 : vector<1x1xf32> to vector<2x256xf32>
      %183 = arith.subf %164, %182 : vector<2x256xf32>
      %cst_70 = arith.constant 9.99999974E-6 : f32
      %184 = vector.broadcast %cst_70 : f32 to vector<1x1xf32>
      %185 = arith.addf %181, %184 : vector<1x1xf32>
      %186 = math.rsqrt %185 : vector<1x1xf32>
      %187 = vector.broadcast %186 : vector<1x1xf32> to vector<2x256xf32>
      %188 = arith.mulf %183, %187 : vector<2x256xf32>
      %c1_71 = arith.constant 1 : index
      %189 = memref.load %arg4[%c1_71] : memref<3xf32, #tpu.memory_space<smem>>
      %190 = vector.broadcast %189 : f32 to vector<2x256xf32>
      %191 = arith.mulf %188, %190 : vector<2x256xf32>
      %c2_72 = arith.constant 2 : index
      %192 = memref.load %arg4[%c2_72] : memref<3xf32, #tpu.memory_space<smem>>
      %193 = vector.broadcast %192 : f32 to vector<2x256xf32>
      %194 = arith.addf %191, %193 : vector<2x256xf32>
      %cst_73 = arith.constant 0.000000e+00 : f32
      %195 = vector.broadcast %cst_73 : f32 to vector<2x256xf32>
      %196 = arith.subf %195, %194 : vector<2x256xf32>
      %197 = math.exp %196 : vector<2x256xf32>
      %cst_74 = arith.constant 1.000000e+00 : f32
      %198 = vector.broadcast %cst_74 : f32 to vector<2x256xf32>
      %199 = arith.addf %198, %197 : vector<2x256xf32>
      %cst_75 = arith.constant 1.000000e+00 : f32
      %200 = vector.broadcast %cst_75 : f32 to vector<2x256xf32>
      %201 = arith.divf %200, %199 : vector<2x256xf32>
      %c0_76 = arith.constant 0 : index
      %c0_77 = arith.constant 0 : index
      %202 = vector.load %arg5[%c0_76, %c0_77] : memref<2x256xf32, #tpu.memory_space<vmem>>, vector<2x256xf32>
      tpu.vector_store %arg5[%c0_76, %c0_77], %201 {strides = array<i32>} : memref<2x256xf32, #tpu.memory_space<vmem>>, vector<2x256xf32>,
    } else {
    }
    return
  }
  func.func @transform_0(%arg0: i32) -> (i32, i32, i32) {
    %c0_i32 = arith.constant 0 : i32
    %c0_i32_0 = arith.constant 0 : i32
    %c0_i32_1 = arith.constant 0 : i32
    return %c0_i32, %arg0, %c0_i32_0 : i32, i32, i32
  }
  func.func @transform_1(%arg0: i32) -> (i32, i32) {
    %c0_i32 = arith.constant 0 : i32
    %c0_i32_0 = arith.constant 0 : i32
    %c0_i32_1 = arith.constant 0 : i32
    return %c0_i32, %c0_i32_0 : i32, i32
  }
  func.func @transform_2(%arg0: i32) -> i32 {
    %c0_i32 = arith.constant 0 : i32
    %c0_i32_0 = arith.constant 0 : i32
    return %c0_i32 : i32
  }
  func.func @transform_3(%arg0: i32) -> i32 {
    %c0_i32 = arith.constant 0 : i32
    %c0_i32_0 = arith.constant 0 : i32
    return %c0_i32 : i32
  }
  func.func @transform_4(%arg0: i32) -> (i32, i32) {
    %c0_i32 = arith.constant 0 : i32
    %c0_i32_0 = arith.constant 0 : i32
    %c0_i32_1 = arith.constant 0 : i32
    return %c0_i32, %c0_i32_0 : i32, i32
  }
}

</mosaic_0001>

<llo_original>
// kernel: tpu_custom_call.1
$region0: #{tpu_custom_call.1}
  #allocation0 [shape = 'u32[]', space=smem, size = 0x4, offset = 0x4, fixed_abs, tag = 'smem constant byte address 0x4 - core index']
  #allocation1 [shape = 'u32[144,128]{1,0:T(1,128)}', space=vmem, size = 0x12000, scoped, tag = 'internal scratch']
  #allocation2 [shape = 'f32[2,256]{1,0:T(2,128)}', space=vmem, size = 0x800, scoped, tag = 'scratch operand']
  #allocation3 [shape = 'f32[2,256]{1,0:T(2,128)}', space=vmem, size = 0x800, scoped, tag = 'scratch operand']
  %s0 = inlined_call_operand.hbm [shape: f32[2,4,256], index: 0, kind: input, shape index: {}]
  %s1 = inlined_call_operand.hbm [shape: f32[9,256], index: 1, kind: input, shape index: {}]
  %s2 = inlined_call_operand.vmem [shape: f32[18], index: 2, kind: input, shape index: {}]
  %s3 = inlined_call_operand.vmem [shape: f32[3], index: 3, kind: input, shape index: {}]
  %s4 = inlined_call_operand.hbm [shape: f32[2,256], index: 4, kind: output, shape index: {}]
  %s5 = sld [smem:[#allocation0]]
  $region50: #{tpu_custom_call.1} parent=0
    _
  %s7 = ssub.s32 1, %s5
  %s8 = scalar_select 0, %s7, %s5
  $region1: #{tpu_custom_call.1} parent=0
    #allocation4 [shape = 'u8[8192]{0}', space=vmem, size = 0x2000, scoped, tag = 'input window, operand 0, single buffered']
    #allocation5 [shape = 's32[1]{0}', space=sflag, size = 0x4, scoped, tag = 'scoped memory for tpu_custom_call.1']
    #allocation6 [shape = 's32[1]{0}', space=sflag, size = 0x4, scoped, tag = 'scoped memory for tpu_custom_call.1']
    #allocation7 [shape = 's32[1]{0}', space=sflag, size = 0x4, scoped, tag = 'scoped memory for tpu_custom_call.1']
    #allocation8 [shape = 'u8[16384]{0}', space=vmem, size = 0x4000, scoped, tag = 'input window, operand 1, single buffered']
    #allocation9 [shape = 's32[1]{0}', space=sflag, size = 0x4, scoped, tag = 'scoped memory for tpu_custom_call.1']
    #allocation10 [shape = 'u8[512]{0}', space=smem, size = 0x200, scoped, tag = 'input window, operand 2, single buffered']
    #allocation11 [shape = 'u8[512]{0}', space=smem, size = 0x200, scoped, tag = 'input window, operand 3, single buffered']
    #allocation12 [shape = 's32[1]{0}', space=sflag, size = 0x4, scoped, tag = 'scoped memory for tpu_custom_call.1']
    #allocation13 [shape = 'u8[2048]{0}', space=vmem, size = 0x800, scoped, tag = 'output window, operand 0, single buffered']
    %9 = vsyncpa [#allocation5], 0
    %10 = vsyncpa [#allocation9], 0
    %11 = vsyncpa [#allocation7], 0
    %12 = vsyncpa [#allocation12], 0
    %13 = vsyncpa [#allocation6], 0
    // Predicated region
    $region2: #{tpu_custom_call.1} parent=1 // pred_check
      _
    $region3: #{tpu_custom_call.1} parent=1 // pred_check_branch
      %15 = sbr.rel (0) target = $region5
    $region4: #{tpu_custom_call.1} parent=1 // pred_region
      %s17 = ssub.s32 256, 256
      %18 = vsyncadd [#allocation5], %s17
      %s19 = sshll.u32 [#allocation4], 4
      %s20 = int_to_ptr.vmem [resolvable:$true] %s19
      %25 = dma.hbm_to_vmem [thread:$0]  %s0, 256, %s20, [#allocation5], 128, 128, 8
    $region5: #{tpu_custom_call.1} parent=1 // pred_fallthru
      _
    // Predicated region
    $region6: #{tpu_custom_call.1} parent=1 // pred_check
      _
    $region7: #{tpu_custom_call.1} parent=1 // pred_check_branch
      %27 = sbr.rel (0) target = $region9
    $region8: #{tpu_custom_call.1} parent=1 // pred_region
      %s29 = ssub.s32 512, 512
      %30 = vsyncadd [#allocation9], %s29
      %s31 = sshll.u32 [#allocation8], 4
      %s32 = int_to_ptr.vmem [resolvable:$true] %s31
      %37 = dma.hbm_to_vmem [thread:$0]  %s1, 512, %s32, [#allocation9], 256, 256, 16
    $region9: #{tpu_custom_call.1} parent=1 // pred_fallthru
      _
    // Predicated region
    $region10: #{tpu_custom_call.1} parent=1 // pred_check
      _
    $region11: #{tpu_custom_call.1} parent=1 // pred_check_branch
      %39 = sbr.rel (0) target = $region13
    $region12: #{tpu_custom_call.1} parent=1 // pred_region
      %s41 = ssub.s32 16, 16
      %42 = vsyncadd [#allocation7], %s41
      %s44 = sshll.u32 %s2, 4
      %s45 = int_to_ptr.vmem [resolvable:$true] %s44
      %47 = dma.vmem_to_smem %s45, 16, [#allocation10], [#allocation7]
    $region13: #{tpu_custom_call.1} parent=1 // pred_fallthru
      _
    // Predicated region
    $region14: #{tpu_custom_call.1} parent=1 // pred_check
      _
    $region15: #{tpu_custom_call.1} parent=1 // pred_check_branch
      %49 = sbr.rel (0) target = $region17
    $region16: #{tpu_custom_call.1} parent=1 // pred_region
      %s51 = ssub.s32 16, 16
      %52 = vsyncadd [#allocation12], %s51
      %s54 = sshll.u32 %s3, 4
      %s55 = int_to_ptr.vmem [resolvable:$true] %s54
      %57 = dma.vmem_to_smem %s55, 16, [#allocation11], [#allocation12]
    $region17: #{tpu_custom_call.1} parent=1 // pred_fallthru
      _
    // Predicated region
    $region18: #{tpu_custom_call.1} parent=1 // pred_check
      _
    $region19: #{tpu_custom_call.1} parent=1 // pred_check_branch
      %59 = sbr.rel (0) target = $region21
    $region20: #{tpu_custom_call.1} parent=1 // pred_region
      %60 = dma.done [#allocation5], 256
    $region21: #{tpu_custom_call.1} parent=1 // pred_fallthru
      _
    // Predicated region
    $region22: #{tpu_custom_call.1} parent=1 // pred_check
      _
    $region23: #{tpu_custom_call.1} parent=1 // pred_check_branch
      %62 = sbr.rel (0) target = $region25
    $region24: #{tpu_custom_call.1} parent=1 // pred_region
      %63 = dma.done [#allocation9], 512
    $region25: #{tpu_custom_call.1} parent=1 // pred_fallthru
      _
    // Predicated region
    $region26: #{tpu_custom_call.1} parent=1 // pred_check
      _
    $region27: #{tpu_custom_call.1} parent=1 // pred_check_branch
      %65 = sbr.rel (0) target = $region29
    $region28: #{tpu_custom_call.1} parent=1 // pred_region
      %66 = dma.done [#allocation7], 16
    $region29: #{tpu_custom_call.1} parent=1 // pred_fallthru
      _
    // Predicated region
    $region30: #{tpu_custom_call.1} parent=1 // pred_check
      _
    $region31: #{tpu_custom_call.1} parent=1 // pred_check_branch
      %68 = sbr.rel (0) target = $region33
    $region32: #{tpu_custom_call.1} parent=1 // pred_region
      %69 = dma.done [#allocation12], 16
    $region33: #{tpu_custom_call.1} parent=1 // pred_fallthru
      _
    %70 = sfence
    %v71 = vld [vmem:[#allocation4] sm:$0xff]
    %v72 = vld [vmem:[#allocation4 + $0x8] sm:$0xff]
    %v75 = vcombine.high %v71, %v71
    %v76 = vcombine.high %v72, %v72
    %vm79 = vcmask 1043456
    %v80 = vsel %vm79, %v71, -inf
    %v81 = vrot.slane %v80, 4
    %v82 = vmax.f32 %v80, %v81
    %v83 = vrot.slane %v82, 2
    %v84 = vmax.f32 %v82, %v83
    %v85 = vrot.slane %v84, 1
    %v86 = vmax.f32 %v84, %v85
    %v87 = vsel %vm79, %v75, -inf
    %v88 = vrot.slane %v87, 4
    %v89 = vmax.f32 %v87, %v88
    %v90 = vrot.slane %v89, 2
    %v91 = vmax.f32 %v89, %v90
    %v92 = vrot.slane %v91, 1
    %v93 = vmax.f32 %v91, %v92
    %v94 = vsel %vm79, %v72, -inf
    %v95 = vrot.slane %v94, 4
    %v96 = vmax.f32 %v94, %v95
    %v97 = vrot.slane %v96, 2
    %v98 = vmax.f32 %v96, %v97
    %v99 = vrot.slane %v98, 1
    %v100 = vmax.f32 %v98, %v99
    %v101 = vsel %vm79, %v76, -inf
    %v102 = vrot.slane %v101, 4
    %v103 = vmax.f32 %v101, %v102
    %v104 = vrot.slane %v103, 2
    %v105 = vmax.f32 %v103, %v104
    %v106 = vrot.slane %v105, 1
    %v107 = vmax.f32 %v105, %v106
    %v108 = vsel %vm79, %v71, 0.0
    %v109 = vrot.slane %v108, 4
    %v110 = vadd.f32 %v108, %v109
    %v111 = vrot.slane %v110, 2
    %v112 = vadd.f32 %v110, %v111
    %v113 = vrot.slane %v112, 1
    %v114 = vadd.f32 %v112, %v113
    %v115 = vsel %vm79, %v75, 0.0
    %v116 = vrot.slane %v115, 4
    %v117 = vadd.f32 %v115, %v116
    %v118 = vrot.slane %v117, 2
    %v119 = vadd.f32 %v117, %v118
    %v120 = vrot.slane %v119, 1
    %v121 = vadd.f32 %v119, %v120
    %v122 = vsel %vm79, %v72, 0.0
    %v123 = vrot.slane %v122, 4
    %v124 = vadd.f32 %v122, %v123
    %v125 = vrot.slane %v124, 2
    %v126 = vadd.f32 %v124, %v125
    %v127 = vrot.slane %v126, 1
    %v128 = vadd.f32 %v126, %v127
    %v129 = vsel %vm79, %v76, 0.0
    %v130 = vrot.slane %v129, 4
    %v131 = vadd.f32 %v129, %v130
    %v132 = vrot.slane %v131, 2
    %v133 = vadd.f32 %v131, %v132
    %v134 = vrot.slane %v133, 1
    %v135 = vadd.f32 %v133, %v134
    %p136 = scmp.eq.s32.totalorder 0, 0
    // Predicated region
    $region34: #{tpu_custom_call.1} parent=1 // pred_check
      %p137 = pneg %p136
    $region35: #{tpu_custom_call.1} parent=1 // pred_check_branch
      %139 = sbr.rel (%p137) target = $region37
    $region36: #{tpu_custom_call.1} parent=1 // pred_region
      %140 = vst [vmem:[#allocation2] sm:$0xf] -inf
      %141 = vst [vmem:[#allocation3] sm:$0xf] 0.0
    $region37: #{tpu_custom_call.1} parent=1 // pred_fallthru
      _
    %v142 = vld [vmem:[#allocation2] sm:$0xf]
    %v147 = vcombine.low %v86, %v93
    %v149 = vunpack.c.l.s4 1983009808
    %v150 = vunpack.c.0.s8 %v149
    %v151 = vlaneseq
    %v152 = vshrl.u32 %v151, 7
    %v153 = vsub.s32 %v150, %v152
    %v154 = vrot.slane %v147, %v153
    %v155 = vcombine.low %v100, %v107
    %v157 = vunpack.c.l.s4 1983009808
    %v158 = vunpack.c.0.s8 %v157
    %v159 = vlaneseq
    %v160 = vshrl.u32 %v159, 7
    %v161 = vsub.s32 %v158, %v160
    %v162 = vrot.slane %v155, %v161
    %vm163 = vcmask 1044484
    %v164 = vsel %vm163, %v154, %v154
    %vm165 = vcmask 1046534
    %v166 = vsel %vm165, %v154, %v164
    %v167 = vrot.slane %v162, 7
    %vm168 = vcmask 1041409
    %v169 = vsel %vm168, %v167, %v166
    %vm170 = vcmask 1043459
    %v171 = vsel %vm170, %v167, %v169
    %vm172 = vcmask 1045509
    %v173 = vsel %vm172, %v167, %v171
    %vm174 = vcmask 1047559
    %v175 = vsel %vm174, %v167, %v173
    %v177 = vmax.f32 %v142, %v175
    %178 = vst [vmem:[#allocation2] sm:$0xf] %v177
    %v179 = vld [vmem:[#allocation3] sm:$0xf]
    %v184 = vcombine.low %v114, %v121
    %v186 = vunpack.c.l.s4 1983009808
    %v187 = vunpack.c.0.s8 %v186
    %v188 = vlaneseq
    %v189 = vshrl.u32 %v188, 7
    %v190 = vsub.s32 %v187, %v189
    %v191 = vrot.slane %v184, %v190
    %v192 = vcombine.low %v128, %v135
    %v194 = vunpack.c.l.s4 1983009808
    %v195 = vunpack.c.0.s8 %v194
    %v196 = vlaneseq
    %v197 = vshrl.u32 %v196, 7
    %v198 = vsub.s32 %v195, %v197
    %v199 = vrot.slane %v192, %v198
    %v200 = vsel %vm163, %v191, %v191
    %v201 = vsel %vm165, %v191, %v200
    %v202 = vrot.slane %v199, 7
    %v203 = vsel %vm168, %v202, %v201
    %v204 = vsel %vm170, %v202, %v203
    %v205 = vsel %vm172, %v202, %v204
    %v206 = vsel %vm174, %v202, %v205
    %v208 = vadd.f32 %v179, %v206
    %209 = vst [vmem:[#allocation3] sm:$0xf] %v208
    // Predicated region
    $region38: #{tpu_custom_call.1} parent=1 // pred_check
      %p210 = pneg %p136
    $region39: #{tpu_custom_call.1} parent=1 // pred_check_branch
      %212 = sbr.rel (%p210) target = $region41
    $region40: #{tpu_custom_call.1} parent=1 // pred_region
      %v213 = vld [vmem:[#allocation2] sm:$0xf]
      %v214 = vld [vmem:[#allocation3] sm:$0xf]
      %v215 = vmul.f32 %v214, 0.25
      %v218 = vunpack.c.l.s4 1983009808
      %v219 = vunpack.c.0.s8 %v218
      %v220 = vlaneseq
      %v221 = vshrl.u32 %v220, 7
      %v222 = vsub.s32 %v219, %v221
      %v223 = vrot.slane %v213, %v222
      %v224 = vcombine.high %v223, %v223
      %227 = vrot.lane.b32.xlu0 %v223, 34
      %v228 = vpop.permute.xlu0 %227
      %229 = vrot.lane.b32.xlu0 %v224, 34
      %v230 = vpop.permute.xlu0 %229
      %v231 = vlaneseq
      %v232 = vand.u32 %v231, 127
      %vm233 = vcmp.lt.s32.totalorder %v232, 34
      %v234 = vsel %vm233, %v228, %v230
      %v235 = vsel %vm233, %v230, %v228
      %v236 = vld [vmem:[#allocation8] ss:$8 sm:$0x3]
      %s237 = sld [smem:[#allocation10]]
      %v239 = vlaneseq
      %v240 = vshrl.u32 %v239, 7
      %v241 = vsub.s32 0, %v240
      %v242 = vrot.slane %v236, %v241
      %v243 = vlaneseq
      %v244 = vshrl.u32 %v243, 7
      %v245 = vsub.s32 1, %v244
      %v246 = vrot.slane %v236, %v245
      %v249 = vmul.f32 %v235, %v242
      %v250 = vmul.f32 %v234, %v246
      %v251 = vstv %s237
      %v252 = vmul.f32 %v251, %v249
      %v253 = vmul.f32 %v251, %v250
      %v254 = vadd.f32 %v252, 0.0
      %v255 = vadd.f32 %v253, 0.0
      %256 = vrot.lane.b32.xlu0 %v223, 32
      %v257 = vpop.permute.xlu0 %256
      %258 = vrot.lane.b32.xlu0 %v224, 32
      %v259 = vpop.permute.xlu0 %258
      %vm260 = vcmp.lt.s32.totalorder %v232, 32
      %v261 = vsel %vm260, %v257, %v259
      %v262 = vsel %vm260, %v259, %v257
      %s263 = scalar_lea.vmem [#allocation8], 1
      %v264 = vld [vmem:[%s263] ss:$8 sm:$0x3]
      %s265 = sld [smem:[#allocation10 + $0x1]]
      %v267 = vlaneseq
      %v268 = vshrl.u32 %v267, 7
      %v269 = vsub.s32 0, %v268
      %v270 = vrot.slane %v264, %v269
      %v271 = vlaneseq
      %v272 = vshrl.u32 %v271, 7
      %v273 = vsub.s32 1, %v272
      %v274 = vrot.slane %v264, %v273
      %v277 = vmul.f32 %v262, %v270
      %v278 = vmul.f32 %v261, %v274
      %v279 = vstv %s265
      %v280 = vmul.f32 %v279, %v277
      %v281 = vmul.f32 %v279, %v278
      %v282 = vadd.f32 %v254, %v280
      %v283 = vadd.f32 %v255, %v281
      %284 = vrot.lane.b32.xlu0 %v223, 30
      %v285 = vpop.permute.xlu0 %284
      %286 = vrot.lane.b32.xlu0 %v224, 30
      %v287 = vpop.permute.xlu0 %286
      %vm288 = vcmp.lt.s32.totalorder %v232, 30
      %v289 = vsel %vm288, %v285, %v287
      %v290 = vsel %vm288, %v287, %v285
      %s291 = scalar_lea.vmem [#allocation8], 2
      %v292 = vld [vmem:[%s291] ss:$8 sm:$0x3]
      %s293 = sld [smem:[#allocation10 + $0x2]]
      %v295 = vlaneseq
      %v296 = vshrl.u32 %v295, 7
      %v297 = vsub.s32 0, %v296
      %v298 = vrot.slane %v292, %v297
      %v299 = vlaneseq
      %v300 = vshrl.u32 %v299, 7
      %v301 = vsub.s32 1, %v300
      %v302 = vrot.slane %v292, %v301
      %v305 = vmul.f32 %v290, %v298
      %v306 = vmul.f32 %v289, %v302
      %v307 = vstv %s293
      %v308 = vmul.f32 %v307, %v305
      %v309 = vmul.f32 %v307, %v306
      %v310 = vadd.f32 %v282, %v308
      %v311 = vadd.f32 %v283, %v309
      %312 = vrot.lane.b32.xlu0 %v223, 2
      %v313 = vpop.permute.xlu0 %312
      %314 = vrot.lane.b32.xlu0 %v224, 2
      %v315 = vpop.permute.xlu0 %314
      %vm316 = vcmp.lt.s32.totalorder %v232, 2
      %v317 = vsel %vm316, %v313, %v315
      %v318 = vsel %vm316, %v315, %v313
      %s319 = scalar_lea.vmem [#allocation8], 3
      %v320 = vld [vmem:[%s319] ss:$8 sm:$0x3]
      %s321 = sld [smem:[#allocation10 + $0x3]]
      %v323 = vlaneseq
      %v324 = vshrl.u32 %v323, 7
      %v325 = vsub.s32 0, %v324
      %v326 = vrot.slane %v320, %v325
      %v327 = vlaneseq
      %v328 = vshrl.u32 %v327, 7
      %v329 = vsub.s32 1, %v328
      %v330 = vrot.slane %v320, %v329
      %v333 = vmul.f32 %v318, %v326
      %v334 = vmul.f32 %v317, %v330
      %v335 = vstv %s321
      %v336 = vmul.f32 %v335, %v333
      %v337 = vmul.f32 %v335, %v334
      %v338 = vadd.f32 %v310, %v336
      %v339 = vadd.f32 %v311, %v337
      %s340 = scalar_lea.vmem [#allocation8], 4
      %v341 = vld [vmem:[%s340] ss:$8 sm:$0x3]
      %s342 = sld [smem:[#allocation10 + $0x4]]
      %v344 = vlaneseq
      %v345 = vshrl.u32 %v344, 7
      %v346 = vsub.s32 0, %v345
      %v347 = vrot.slane %v341, %v346
      %v348 = vlaneseq
      %v349 = vshrl.u32 %v348, 7
      %v350 = vsub.s32 1, %v349
      %v351 = vrot.slane %v341, %v350
      %v352 = vcombine.low %v347, %v351
      %v354 = vunpack.c.l.s4 1983009808
      %v355 = vunpack.c.0.s8 %v354
      %v356 = vlaneseq
      %v357 = vshrl.u32 %v356, 7
      %v358 = vsub.s32 %v355, %v357
      %v359 = vrot.slane %v352, %v358
      %v361 = vmul.f32 %v213, %v359
      %v362 = vstv %s342
      %v363 = vmul.f32 %v362, %v361
      %v366 = vunpack.c.l.s4 1983009808
      %v367 = vunpack.c.0.s8 %v366
      %v368 = vlaneseq
      %v369 = vshrl.u32 %v368, 7
      %v370 = vsub.s32 %v367, %v369
      %v371 = vrot.slane %v363, %v370
      %v372 = vcombine.high %v371, %v371
      %v375 = vadd.f32 %v338, %v371
      %v376 = vadd.f32 %v339, %v372
      %377 = vrot.lane.b32.xlu0 %v223, 126
      %v378 = vpop.permute.xlu0 %377
      %379 = vrot.lane.b32.xlu0 %v224, 126
      %v380 = vpop.permute.xlu0 %379
      %vm381 = vcmp.lt.s32.totalorder %v232, 126
      %v382 = vsel %vm381, %v378, %v380
      %v383 = vsel %vm381, %v380, %v378
      %s384 = scalar_lea.vmem [#allocation8], 5
      %v385 = vld [vmem:[%s384] ss:$8 sm:$0x3]
      %s386 = sld [smem:[#allocation10 + $0x5]]
      %v388 = vlaneseq
      %v389 = vshrl.u32 %v388, 7
      %v390 = vsub.s32 0, %v389
      %v391 = vrot.slane %v385, %v390
      %v392 = vlaneseq
      %v393 = vshrl.u32 %v392, 7
      %v394 = vsub.s32 1, %v393
      %v395 = vrot.slane %v385, %v394
      %v398 = vmul.f32 %v382, %v391
      %v399 = vmul.f32 %v383, %v395
      %v400 = vstv %s386
      %v401 = vmul.f32 %v400, %v398
      %v402 = vmul.f32 %v400, %v399
      %v403 = vadd.f32 %v375, %v401
      %v404 = vadd.f32 %v376, %v402
      %405 = vrot.lane.b32.xlu0 %v223, 98
      %v406 = vpop.permute.xlu0 %405
      %407 = vrot.lane.b32.xlu0 %v224, 98
      %v408 = vpop.permute.xlu0 %407
      %vm409 = vcmp.lt.s32.totalorder %v232, 98
      %v410 = vsel %vm409, %v406, %v408
      %v411 = vsel %vm409, %v408, %v406
      %s412 = scalar_lea.vmem [#allocation8], 6
      %v413 = vld [vmem:[%s412] ss:$8 sm:$0x3]
      %s414 = sld [smem:[#allocation10 + $0x6]]
      %v416 = vlaneseq
      %v417 = vshrl.u32 %v416, 7
      %v418 = vsub.s32 0, %v417
      %v419 = vrot.slane %v413, %v418
      %v420 = vlaneseq
      %v421 = vshrl.u32 %v420, 7
      %v422 = vsub.s32 1, %v421
      %v423 = vrot.slane %v413, %v422
      %v426 = vmul.f32 %v410, %v419
      %v427 = vmul.f32 %v411, %v423
      %v428 = vstv %s414
      %v429 = vmul.f32 %v428, %v426
      %v430 = vmul.f32 %v428, %v427
      %v431 = vadd.f32 %v403, %v429
      %v432 = vadd.f32 %v404, %v430
      %433 = vrot.lane.b32.xlu0 %v223, 96
      %v434 = vpop.permute.xlu0 %433
      %435 = vrot.lane.b32.xlu0 %v224, 96
      %v436 = vpop.permute.xlu0 %435
      %vm437 = vcmp.lt.s32.totalorder %v232, 96
      %v438 = vsel %vm437, %v434, %v436
      %v439 = vsel %vm437, %v436, %v434
      %s440 = scalar_lea.vmem [#allocation8], 7
      %v441 = vld [vmem:[%s440] ss:$8 sm:$0x3]
      %s442 = sld [smem:[#allocation10 + $0x7]]
      %v444 = vlaneseq
      %v445 = vshrl.u32 %v444, 7
      %v446 = vsub.s32 0, %v445
      %v447 = vrot.slane %v441, %v446
      %v448 = vlaneseq
      %v449 = vshrl.u32 %v448, 7
      %v450 = vsub.s32 1, %v449
      %v451 = vrot.slane %v441, %v450
      %v454 = vmul.f32 %v438, %v447
      %v455 = vmul.f32 %v439, %v451
      %v456 = vstv %s442
      %v457 = vmul.f32 %v456, %v454
      %v458 = vmul.f32 %v456, %v455
      %v459 = vadd.f32 %v431, %v457
      %v460 = vadd.f32 %v432, %v458
      %461 = vrot.lane.b32.xlu0 %v223, 94
      %v462 = vpop.permute.xlu0 %461
      %463 = vrot.lane.b32.xlu0 %v224, 94
      %v464 = vpop.permute.xlu0 %463
      %vm465 = vcmp.lt.s32.totalorder %v232, 94
      %v466 = vsel %vm465, %v462, %v464
      %v467 = vsel %vm465, %v464, %v462
      %s468 = scalar_lea.vmem [#allocation8], 16
      %v469 = vld [vmem:[%s468] ss:$8 sm:$0x3]
      %s470 = sld [smem:[#allocation10 + $0x8]]
      %v472 = vlaneseq
      %v473 = vshrl.u32 %v472, 7
      %v474 = vsub.s32 0, %v473
      %v475 = vrot.slane %v469, %v474
      %v476 = vlaneseq
      %v477 = vshrl.u32 %v476, 7
      %v478 = vsub.s32 1, %v477
      %v479 = vrot.slane %v469, %v478
      %v482 = vmul.f32 %v466, %v475
      %v483 = vmul.f32 %v467, %v479
      %v484 = vstv %s470
      %v485 = vmul.f32 %v484, %v482
      %v486 = vmul.f32 %v484, %v483
      %v487 = vadd.f32 %v459, %v485
      %v488 = vadd.f32 %v460, %v486
      %v491 = vunpack.c.l.s4 1983009808
      %v492 = vunpack.c.0.s8 %v491
      %v493 = vlaneseq
      %v494 = vshrl.u32 %v493, 7
      %v495 = vsub.s32 %v492, %v494
      %v496 = vrot.slane %v215, %v495
      %v497 = vcombine.high %v496, %v496
      %500 = vrot.lane.b32.xlu0 %v496, 34
      %v501 = vpop.permute.xlu0 %500
      %502 = vrot.lane.b32.xlu0 %v497, 34
      %v503 = vpop.permute.xlu0 %502
      %v504 = vsel %vm233, %v501, %v503
      %v505 = vsel %vm233, %v503, %v501
      %s506 = sld [smem:[#allocation10 + $0x9]]
      %v507 = vmul.f32 %v505, %v242
      %v508 = vmul.f32 %v504, %v246
      %v509 = vstv %s506
      %v510 = vmul.f32 %v509, %v507
      %v511 = vmul.f32 %v509, %v508
      %v512 = vadd.f32 %v487, %v510
      %v513 = vadd.f32 %v488, %v511
      %514 = vrot.lane.b32.xlu0 %v496, 32
      %v515 = vpop.permute.xlu0 %514
      %516 = vrot.lane.b32.xlu0 %v497, 32
      %v517 = vpop.permute.xlu0 %516
      %v518 = vsel %vm260, %v515, %v517
      %v519 = vsel %vm260, %v517, %v515
      %s520 = sld [smem:[#allocation10 + $0xa]]
      %v521 = vmul.f32 %v519, %v270
      %v522 = vmul.f32 %v518, %v274
      %v523 = vstv %s520
      %v524 = vmul.f32 %v523, %v521
      %v525 = vmul.f32 %v523, %v522
      %v526 = vadd.f32 %v512, %v524
      %v527 = vadd.f32 %v513, %v525
      %528 = vrot.lane.b32.xlu0 %v496, 30
      %v529 = vpop.permute.xlu0 %528
      %530 = vrot.lane.b32.xlu0 %v497, 30
      %v531 = vpop.permute.xlu0 %530
      %v532 = vsel %vm288, %v529, %v531
      %v533 = vsel %vm288, %v531, %v529
      %s534 = sld [smem:[#allocation10 + $0xb]]
      %v535 = vmul.f32 %v533, %v298
      %v536 = vmul.f32 %v532, %v302
      %v537 = vstv %s534
      %v538 = vmul.f32 %v537, %v535
      %v539 = vmul.f32 %v537, %v536
      %v540 = vadd.f32 %v526, %v538
      %v541 = vadd.f32 %v527, %v539
      %542 = vrot.lane.b32.xlu0 %v496, 2
      %v543 = vpop.permute.xlu0 %542
      %544 = vrot.lane.b32.xlu0 %v497, 2
      %v545 = vpop.permute.xlu0 %544
      %v546 = vsel %vm316, %v543, %v545
      %v547 = vsel %vm316, %v545, %v543
      %s548 = sld [smem:[#allocation10 + $0xc]]
      %v549 = vmul.f32 %v547, %v326
      %v550 = vmul.f32 %v546, %v330
      %v551 = vstv %s548
      %v552 = vmul.f32 %v551, %v549
      %v553 = vmul.f32 %v551, %v550
      %v554 = vadd.f32 %v540, %v552
      %v555 = vadd.f32 %v541, %v553
      %s556 = sld [smem:[#allocation10 + $0xd]]
      %v557 = vmul.f32 %v215, %v359
      %v558 = vstv %s556
      %v559 = vmul.f32 %v558, %v557
      %v562 = vunpack.c.l.s4 1983009808
      %v563 = vunpack.c.0.s8 %v562
      %v564 = vlaneseq
      %v565 = vshrl.u32 %v564, 7
      %v566 = vsub.s32 %v563, %v565
      %v567 = vrot.slane %v559, %v566
      %v568 = vcombine.high %v567, %v567
      %v571 = vadd.f32 %v554, %v567
      %v572 = vadd.f32 %v555, %v568
      %573 = vrot.lane.b32.xlu0 %v496, 126
      %v574 = vpop.permute.xlu0 %573
      %575 = vrot.lane.b32.xlu0 %v497, 126
      %v576 = vpop.permute.xlu0 %575
      %v577 = vsel %vm381, %v574, %v576
      %v578 = vsel %vm381, %v576, %v574
      %s579 = sld [smem:[#allocation10 + $0xe]]
      %v580 = vmul.f32 %v577, %v391
      %v581 = vmul.f32 %v578, %v395
      %v582 = vstv %s579
      %v583 = vmul.f32 %v582, %v580
      %v584 = vmul.f32 %v582, %v581
      %v585 = vadd.f32 %v571, %v583
      %v586 = vadd.f32 %v572, %v584
      %587 = vrot.lane.b32.xlu0 %v496, 98
      %v588 = vpop.permute.xlu0 %587
      %589 = vrot.lane.b32.xlu0 %v497, 98
      %v590 = vpop.permute.xlu0 %589
      %v591 = vsel %vm409, %v588, %v590
      %v592 = vsel %vm409, %v590, %v588
      %s593 = sld [smem:[#allocation10 + $0xf]]
      %v594 = vmul.f32 %v591, %v419
      %v595 = vmul.f32 %v592, %v423
      %v596 = vstv %s593
      %v597 = vmul.f32 %v596, %v594
      %v598 = vmul.f32 %v596, %v595
      %v599 = vadd.f32 %v585, %v597
      %v600 = vadd.f32 %v586, %v598
      %601 = vrot.lane.b32.xlu0 %v496, 96
      %v602 = vpop.permute.xlu0 %601
      %603 = vrot.lane.b32.xlu0 %v497, 96
      %v604 = vpop.permute.xlu0 %603
      %v605 = vsel %vm437, %v602, %v604
      %v606 = vsel %vm437, %v604, %v602
      %s607 = sld [smem:[#allocation10 + $0x10]]
      %v608 = vmul.f32 %v605, %v447
      %v609 = vmul.f32 %v606, %v451
      %v610 = vstv %s607
      %v611 = vmul.f32 %v610, %v608
      %v612 = vmul.f32 %v610, %v609
      %v613 = vadd.f32 %v599, %v611
      %v614 = vadd.f32 %v600, %v612
      %615 = vrot.lane.b32.xlu0 %v496, 94
      %v616 = vpop.permute.xlu0 %615
      %617 = vrot.lane.b32.xlu0 %v497, 94
      %v618 = vpop.permute.xlu0 %617
      %v619 = vsel %vm465, %v616, %v618
      %v620 = vsel %vm465, %v618, %v616
      %s621 = sld [smem:[#allocation10 + $0x11]]
      %v622 = vmul.f32 %v619, %v475
      %v623 = vmul.f32 %v620, %v479
      %v624 = vstv %s621
      %v625 = vmul.f32 %v624, %v622
      %v626 = vmul.f32 %v624, %v623
      %v627 = vadd.f32 %v613, %v625
      %v628 = vadd.f32 %v614, %v626
      %s629 = sld [smem:[#allocation11]]
      %v630 = vstv %s629
      %v631 = vmul.f32 %v627, %v630
      %v632 = vmul.f32 %v628, %v630
      %vm633 = vcmask 1041408
      %v634 = vsel %vm633, %v631, 0.0
      %v635 = vsel %vm633, %v632, 0.0
      %v636 = vadd.f32 %v634, %v635
      %637 = vadd.xlane.f32.xlu0 %v636
      %v638 = vpop.xlane.xlu0 %637
      %v639 = vrot.slane %v638, 4
      %v640 = vadd.f32 %v638, %v639
      %v641 = vrot.slane %v640, 2
      %v642 = vadd.f32 %v640, %v641
      %v643 = vrot.slane %v642, 1
      %v644 = vadd.f32 %v642, %v643
      %s645 = vtos %v644
      %v646 = vstv %s645
      %v647 = vrcp.pop 512.0
      %v648 = vmul.f32 %v646, %v647
      %v649 = vsub.f32 %v631, %v648
      %v650 = vsub.f32 %v632, %v648
      %v651 = vmul.f32 %v649, %v649
      %v652 = vmul.f32 %v650, %v650
      %v653 = vsel %vm633, %v651, 0.0
      %v654 = vsel %vm633, %v652, 0.0
      %v655 = vadd.f32 %v653, %v654
      %656 = vadd.xlane.f32.xlu0 %v655
      %v657 = vpop.xlane.xlu0 %656
      %v658 = vrot.slane %v657, 4
      %v659 = vadd.f32 %v657, %v658
      %v660 = vrot.slane %v659, 2
      %v661 = vadd.f32 %v659, %v660
      %v662 = vrot.slane %v661, 1
      %v663 = vadd.f32 %v661, %v662
      %s664 = vtos %v663
      %v665 = vstv %s664
      %v666 = vmul.f32 %v665, %v647
      %v667 = vadd.f32 %v666, 1e-05
      %v668 = vrsqrt.pop %v667
      %v669 = vmul.f32 %v649, %v668
      %v670 = vmul.f32 %v650, %v668
      %s671 = sld [smem:[#allocation11 + $0x1]]
      %v672 = vstv %s671
      %v673 = vmul.f32 %v669, %v672
      %v674 = vmul.f32 %v670, %v672
      %s675 = sld [smem:[#allocation11 + $0x2]]
      %v676 = vstv %s675
      %v677 = vadd.f32 %v673, %v676
      %v678 = vadd.f32 %v674, %v676
      %v679 = vsub.f32 0.0, %v677
      %v680 = vsub.f32 0.0, %v678
      %v681 = vmul.f32 %v679, 1.442695
      %v682 = vpow.pop %v681
      %v683 = vmul.f32 %v680, 1.442695
      %v684 = vpow.pop %v683
      %v685 = vadd.f32 %v682, 1.0
      %v686 = vadd.f32 %v684, 1.0
      %v687 = vrcp.pop %v685
      %v688 = vmul.f32 1.0, %v687
      %v689 = vrcp.pop %v686
      %v690 = vmul.f32 1.0, %v689
      %v693 = vcombine.low %v688, %v690
      %v695 = vunpack.c.l.s4 1983009808
      %v696 = vunpack.c.0.s8 %v695
      %v697 = vlaneseq
      %v698 = vshrl.u32 %v697, 7
      %v699 = vsub.s32 %v696, %v698
      %v700 = vrot.slane %v693, %v699
      %702 = vst [vmem:[#allocation13] sm:$0xf] %v700
    $region41: #{tpu_custom_call.1} parent=1 // pred_fallthru
      _
    // Predicated region
    $region42: #{tpu_custom_call.1} parent=1 // pred_check
      _
    $region43: #{tpu_custom_call.1} parent=1 // pred_check_branch
      %704 = sbr.rel (0) target = $region45
    $region44: #{tpu_custom_call.1} parent=1 // pred_region
      %s706 = ssub.s32 64, 64
      %707 = vsyncadd [#allocation6], %s706
      %s709 = sshll.u32 [#allocation13], 4
      %s710 = int_to_ptr.vmem [resolvable:$true] %s709
      %712 = dma.vmem_to_hbm [thread:$0]  %s710, 64, %s4, [#allocation6]
    $region45: #{tpu_custom_call.1} parent=1 // pred_fallthru
      _
    // Predicated region
    $region46: #{tpu_custom_call.1} parent=1 // pred_check
      _
    $region47: #{tpu_custom_call.1} parent=1 // pred_check_branch
      %714 = sbr.rel (0) target = $region49
    $region48: #{tpu_custom_call.1} parent=1 // pred_region
      %715 = dma.done [#allocation6], 64
    $region49: #{tpu_custom_call.1} parent=1 // pred_fallthru
      _
    %716 = vsyncpa [#allocation5], 1
    %717 = vsyncpa [#allocation9], 1
    %718 = vsyncpa [#allocation6], 1
    %719 = vsyncpa [#allocation7], 1
    %720 = vsyncpa [#allocation12], 1

</llo_original>
